<compile_context>
chip_gen: v7x
topology: tpu7x:2x2x1
jax: 0.10.0
libtpu: 0.0.40
codegen_flags: <defaults>
</compile_context>

<pallas_src>
import functools

import jax
import jax.numpy as jnp
from jax.experimental import pallas as pl
from jax.experimental.pallas import tpu as pltpu

TILE_E = 2048  # rows of k per grid step; >=2048 amortizes per-step overhead.


def _round_up(x, m):
    return ((x + m - 1) // m) * m


def _vmem_limit_bytes():
    # ~75% of physical VMEM, capped at 96 MiB:
    #   v5e/v6e (128 MiB physical) -> 96 MiB; v7x (64 MiB per TC) -> 48 MiB.
    try:
        cap = int(pltpu.get_tpu_info().vmem_capacity_bytes)
    except Exception:
        cap = 64 * 1024 * 1024  # conservative fallback (v7x-sized)
    return max(32 * 1024 * 1024, min((cap * 3) // 4, 96 * 1024 * 1024))


def edge_decoder_kernel(k_ref, w1_ref, b1_ref, d2_ref, bd2_ref, probs_ref):
    # lin1 + ReLU on the MXU: (tile_e, 2C) @ (2C, C) + (1, C)
    h = jnp.dot(k_ref[...], w1_ref[...], preferred_element_type=jnp.float32)
    h = jnp.maximum(h + b1_ref[...], 0.0)

    # lin2 + softmax over 2 classes folded into one tiny MXU matmul + sigmoid:
    #   softmax([l0, l1]) == sigmoid([l0 - l1, l1 - l0]) == sigmoid(h @ D + bD)
    s = jnp.dot(h, d2_ref[...], preferred_element_type=jnp.float32) + bd2_ref[...]
    probs_ref[...] = 1.0 / (1.0 + jnp.exp(-s))


@functools.partial(jax.jit, static_argnames=("tile_e",))
def edge_decoder(z_materials, z_concepts, edge_label_index, params, *, tile_e=None):
    """z_materials: (Nm, C), z_concepts: (Nc, C), edge_label_index: (2, E)."""
    w1, b1, w2, b2 = params  # (2C, C), (1, C), (C, 2), (1, 2)
    row, col = edge_label_index[0], edge_label_index[1]

    # The gather + concat *is* the required `k` output: XLA writes it to HBM
    # once and the very same array is streamed through the kernel in tiles.
    k = jnp.concatenate([z_materials[row], z_concepts[col]], axis=-1)  # (E, 2C)
    E, two_c = k.shape
    C = two_c // 2

    if E == 0:
        return jnp.zeros((0, 2), jnp.float32), k

    # Fold lin2 + softmax(dim=-1) into D = [-d, d] (C, 2), bD = [-bd, bd] (1, 2)
    # with d = w2[:, 1] - w2[:, 0], bd = b2[1] - b2[0].
    d = (w2[:, 1] - w2[:, 0]).astype(jnp.float32)          # (C,)
    d2 = jnp.stack([-d, d], axis=1)                        # (C, 2)
    bd = (b2[0, 1] - b2[0, 0]).astype(jnp.float32)
    bd2 = jnp.stack([-bd, bd]).reshape(1, 2)               # (1, 2)

    if tile_e is None:
        tile_e = min(TILE_E, _round_up(E, 8))              # sublane multiple of 8
    grid = (pl.cdiv(E, tile_e),)                           # partial last block is masked

    probs = pl.pallas_call(
        edge_decoder_kernel,
        grid=grid,
        in_specs=[
            pl.BlockSpec((tile_e, two_c), lambda i: (i, 0)),  # k tile (streamed)
            pl.BlockSpec((two_c, C), lambda i: (0, 0)),       # w1 (VMEM-resident)
            pl.BlockSpec((1, C), lambda i: (0, 0)),           # b1 (resident)
            pl.BlockSpec((C, 2), lambda i: (0, 0)),           # D  (resident)
            pl.BlockSpec((1, 2), lambda i: (0, 0)),           # bD (resident)
        ],
        out_specs=pl.BlockSpec((tile_e, 2), lambda i: (i, 0)),
        out_shape=jax.ShapeDtypeStruct((E, 2), jnp.float32),
        compiler_params=pltpu.CompilerParams(
            dimension_semantics=("parallel",),
            vmem_limit_bytes=_vmem_limit_bytes(),
        ),
    )(k, w1, b1, d2, bd2)

    return probs, k


def init_params(key, out_channels):
    """Deterministic init matching the torch Linear shapes (stored transposed)."""
    k1, k2, k3, k4 = jax.random.split(key, 4)
    c = out_channels
    # torch Linear(in, out) weight is (out, in); we store (in, out) for x @ W.
    lim1 = 1.0 / jnp.sqrt(2.0 * c)
    w1 = jax.random.uniform(k1, (2 * c, c), jnp.float32, -lim1, lim1)
    b1 = jax.random.uniform(k2, (1, c), jnp.float32, -lim1, lim1)
    lim2 = 1.0 / jnp.sqrt(1.0 * c)
    w2 = jax.random.uniform(k3, (c, 2), jnp.float32, -lim2, lim2)
    b2 = jax.random.uniform(k4, (1, 2), jnp.float32, -lim2, lim2)
    return w1, b1, w2, b2


def edge_decoder_ref(z_materials, z_concepts, edge_label_index, params):
    w1, b1, w2, b2 = params
    row, col = edge_label_index[0], edge_label_index[1]
    k = jnp.concatenate([z_materials[row], z_concepts[col]], axis=-1)
    h = jax.nn.relu(k @ w1 + b1)
    logits = h @ w2 + b2
    return jax.nn.softmax(logits, axis=-1), k


if __name__ == "__main__":
    key = jax.random.PRNGKey(0)
    k_zm, k_zc, k_idx, k_par = jax.random.split(key, 4)

    out_channels = 32
    num_materials, num_concepts, num_edges = 16, 12, 10  # E=10 exercises the tail

    z_materials = jax.random.normal(k_zm, (num_materials, out_channels), jnp.float32)
    z_concepts = jax.random.normal(k_zc, (num_concepts, out_channels), jnp.float32)
    row = jax.random.randint(k_idx, (num_edges,), 0, num_materials)
    col = jax.random.randint(jax.random.fold_in(k_idx, 1), (num_edges,), 0, num_concepts)
    edge_label_index = jnp.stack([row, col], axis=0)

    params = init_params(k_par, out_channels)

    probs_ref, k_ref_arr = edge_decoder_ref(z_materials, z_concepts, edge_label_index, params)

    # Single-tile path (tile_e >= E, masked tail inside one block).
    probs, k_out = edge_decoder(z_materials, z_concepts, edge_label_index, params)
    probs = jax.block_until_ready(probs)
    k_out = jax.block_until_ready(k_out)
    assert probs.shape == (num_edges, 2)
    assert k_out.shape == (num_edges, 2 * out_channels)
    assert jnp.allclose(probs, probs_ref, atol=1e-5, rtol=1e-5)
    assert jnp.allclose(k_out, k_ref_arr, atol=1e-5, rtol=1e-5)
    assert jnp.allclose(jnp.sum(probs, axis=-1), 1.0, atol=1e-5)

    # Multi-tile path with a partial last block (tile_e=8 -> grid of 2, last
    # block has only 2 valid rows) to exercise the masked-tail pipeline.
    probs2, _ = edge_decoder(z_materials, z_concepts, edge_label_index, params, tile_e=8)
    probs2 = jax.block_until_ready(probs2)
    assert jnp.allclose(probs2, probs_ref, atol=1e-5, rtol=1e-5)

    print("KERNEL_OK")
</pallas_src>

<mosaic_0001>
module attributes {stable_mosaic.version = 11 : i64} {
  func.func @edge_decoder_kernel(%arg0: i32, %arg1: memref<16x64xf32, #tpu.memory_space<vmem>>, %arg2: memref<64x32xf32, #tpu.memory_space<vmem>>, %arg3: memref<1x32xf32, #tpu.memory_space<vmem>>, %arg4: memref<32x2xf32, #tpu.memory_space<vmem>>, %arg5: memref<1x2xf32, #tpu.memory_space<vmem>>, %arg6: memref<16x2xf32, #tpu.memory_space<vmem>>) attributes {dimension_semantics = [#tpu.dimension_semantics<parallel>], iteration_bounds = array<i64: 1>, scalar_prefetch = 0 : i64, scratch_operands = 0 : i64, tpu.core_type = #tpu.core_type<tc>, window_params = [{transform_indices = @transform_0, window_bounds = array<i64: 16, 64>}, {pipeline_mode = #tpu.pipeline_mode<synchronous>, transform_indices = @transform_1, window_bounds = array<i64: 64, 32>}, {pipeline_mode = #tpu.pipeline_mode<synchronous>, transform_indices = @transform_2, window_bounds = array<i64: 1, 32>}, {pipeline_mode = #tpu.pipeline_mode<synchronous>, transform_indices = @transform_3, window_bounds = array<i64: 32, 2>}, {pipeline_mode = #tpu.pipeline_mode<synchronous>, transform_indices = @transform_4, window_bounds = array<i64: 1, 2>}, {transform_indices = @transform_5, window_bounds = array<i64: 16, 2>}]} {
    %c0 = arith.constant 0 : index
    %c0_0 = arith.constant 0 : index
    %0 = vector.load %arg1[%c0, %c0_0] : memref<16x64xf32, #tpu.memory_space<vmem>>, vector<16x64xf32>
    %c0_1 = arith.constant 0 : index
    %c0_2 = arith.constant 0 : index
    %1 = vector.load %arg2[%c0_1, %c0_2] : memref<64x32xf32, #tpu.memory_space<vmem>>, vector<64x32xf32>
    %cst = arith.constant dense<0.000000e+00> : vector<16x32xf32>
    %2 = tpu.matmul %0, %1, %cst {dimension_numbers = #tpu.dot_dimension_numbers<[1], [0], [0], [1], [0, 0, 1, 1], [], []>} : vector<16x64xf32>, vector<64x32xf32>, vector<16x32xf32> -> vector<16x32xf32>
    %c0_3 = arith.constant 0 : index
    %c0_4 = arith.constant 0 : index
    %3 = vector.load %arg3[%c0_3, %c0_4] : memref<1x32xf32, #tpu.memory_space<vmem>>, vector<1x32xf32>
    %4 = vector.broadcast %3 : vector<1x32xf32> to vector<16x32xf32>
    %5 = arith.addf %2, %4 : vector<16x32xf32>
    %cst_5 = arith.constant 0.000000e+00 : f32
    %6 = vector.broadcast %cst_5 : f32 to vector<16x32xf32>
    %7 = arith.maximumf %5, %6 : vector<16x32xf32>
    %c0_6 = arith.constant 0 : index
    %c0_7 = arith.constant 0 : index
    %8 = vector.load %arg4[%c0_6, %c0_7] : memref<32x2xf32, #tpu.memory_space<vmem>>, vector<32x2xf32>
    %cst_8 = arith.constant dense<0.000000e+00> : vector<16x2xf32>
    %9 = tpu.matmul %7, %8, %cst_8 {dimension_numbers = #tpu.dot_dimension_numbers<[1], [0], [0], [1], [0, 0, 1, 1], [], []>} : vector<16x32xf32>, vector<32x2xf32>, vector<16x2xf32> -> vector<16x2xf32>
    %c0_9 = arith.constant 0 : index
    %c0_10 = arith.constant 0 : index
    %10 = vector.load %arg5[%c0_9, %c0_10] : memref<1x2xf32, #tpu.memory_space<vmem>>, vector<1x2xf32>
    %11 = vector.broadcast %10 : vector<1x2xf32> to vector<16x2xf32>
    %12 = arith.addf %9, %11 : vector<16x2xf32>
    %cst_11 = arith.constant 0.000000e+00 : f32
    %13 = vector.broadcast %cst_11 : f32 to vector<16x2xf32>
    %14 = arith.subf %13, %12 : vector<16x2xf32>
    %15 = math.exp %14 : vector<16x2xf32>
    %cst_12 = arith.constant 1.000000e+00 : f32
    %16 = vector.broadcast %cst_12 : f32 to vector<16x2xf32>
    %17 = arith.addf %16, %15 : vector<16x2xf32>
    %cst_13 = arith.constant 1.000000e+00 : f32
    %18 = vector.broadcast %cst_13 : f32 to vector<16x2xf32>
    %19 = arith.divf %18, %17 : vector<16x2xf32>
    %c0_14 = arith.constant 0 : index
    %c0_15 = arith.constant 0 : index
    %20 = vector.load %arg6[%c0_14, %c0_15] : memref<16x2xf32, #tpu.memory_space<vmem>>, vector<16x2xf32>
    tpu.vector_store %arg6[%c0_14, %c0_15], %19 {strides = array<i32>} : memref<16x2xf32, #tpu.memory_space<vmem>>, vector<16x2xf32>,
    return
  }
  func.func @transform_0(%arg0: i32) -> (i32, i32) {
    %c0_i32 = arith.constant 0 : i32
    %c0_i32_0 = arith.constant 0 : i32
    return %arg0, %c0_i32 : i32, i32
  }
  func.func @transform_1(%arg0: i32) -> (i32, i32) {
    %c0_i32 = arith.constant 0 : i32
    %c0_i32_0 = arith.constant 0 : i32
    %c0_i32_1 = arith.constant 0 : i32
    return %c0_i32, %c0_i32_0 : i32, i32
  }
  func.func @transform_2(%arg0: i32) -> (i32, i32) {
    %c0_i32 = arith.constant 0 : i32
    %c0_i32_0 = arith.constant 0 : i32
    %c0_i32_1 = arith.constant 0 : i32
    return %c0_i32, %c0_i32_0 : i32, i32
  }
  func.func @transform_3(%arg0: i32) -> (i32, i32) {
    %c0_i32 = arith.constant 0 : i32
    %c0_i32_0 = arith.constant 0 : i32
    %c0_i32_1 = arith.constant 0 : i32
    return %c0_i32, %c0_i32_0 : i32, i32
  }
  func.func @transform_4(%arg0: i32) -> (i32, i32) {
    %c0_i32 = arith.constant 0 : i32
    %c0_i32_0 = arith.constant 0 : i32
    %c0_i32_1 = arith.constant 0 : i32
    return %c0_i32, %c0_i32_0 : i32, i32
  }
  func.func @transform_5(%arg0: i32) -> (i32, i32) {
    %c0_i32 = arith.constant 0 : i32
    %c0_i32_0 = arith.constant 0 : i32
    return %arg0, %c0_i32 : i32, i32
  }
}

</mosaic_0001>

<llo_original>
// kernel: edge_decoder.1
$region0: #{edge_decoder.1}
  #allocation0 [shape = 'u32[]', space=smem, size = 0x4, offset = 0x4, fixed_abs, tag = 'smem constant byte address 0x4 - core index']
  #allocation1 [shape = 'u32[144,128]{1,0:T(1,128)}', space=vmem, size = 0x12000, scoped, tag = 'internal scratch']
  %s0 = inlined_call_operand.vmem [shape: f32[10,64], index: 0, kind: input, shape index: {}]
  %s1 = inlined_call_operand.vmem [shape: f32[64,32], index: 1, kind: input, shape index: {}]
  %s2 = inlined_call_operand.vmem [shape: f32[1,32], index: 2, kind: input, shape index: {}]
  %s3 = inlined_call_operand.vmem [shape: f32[32,2], index: 3, kind: input, shape index: {}]
  %s4 = inlined_call_operand.vmem [shape: f32[1,2], index: 4, kind: input, shape index: {}]
  %s5 = inlined_call_operand.vmem [shape: f32[10,2], index: 5, kind: output, shape index: {}]
  %s6 = sld [smem:[#allocation0]]
  $region30: #{edge_decoder.1} parent=0
    _
  %s8 = ssub.s32 1, %s6
  %s9 = scalar_select 0, %s8, %s6
  // Predicated region
  $region2: #{edge_decoder.1} parent=0 // pred_check
    _
  $region3: #{edge_decoder.1} parent=0 // pred_check_branch
    %11 = sbr.rel (0) target = $region5
  $region4: #{edge_decoder.1} parent=0 // pred_region
    _
  $region5: #{edge_decoder.1} parent=0 // pred_fallthru
    _
  // Predicated region
  $region6: #{edge_decoder.1} parent=0 // pred_check
    _
  $region7: #{edge_decoder.1} parent=0 // pred_check_branch
    %13 = sbr.rel (0) target = $region9
  $region8: #{edge_decoder.1} parent=0 // pred_region
    _
  $region9: #{edge_decoder.1} parent=0 // pred_fallthru
    _
  // Predicated region
  $region10: #{edge_decoder.1} parent=0 // pred_check
    _
  $region11: #{edge_decoder.1} parent=0 // pred_check_branch
    %15 = sbr.rel (0) target = $region13
  $region12: #{edge_decoder.1} parent=0 // pred_region
    _
  $region13: #{edge_decoder.1} parent=0 // pred_fallthru
    _
  // Predicated region
  $region14: #{edge_decoder.1} parent=0 // pred_check
    _
  $region15: #{edge_decoder.1} parent=0 // pred_check_branch
    %17 = sbr.rel (0) target = $region17
  $region16: #{edge_decoder.1} parent=0 // pred_region
    _
  $region17: #{edge_decoder.1} parent=0 // pred_fallthru
    _
  // Predicated region
  $region18: #{edge_decoder.1} parent=0 // pred_check
    _
  $region19: #{edge_decoder.1} parent=0 // pred_check_branch
    %19 = sbr.rel (0) target = $region21
  $region20: #{edge_decoder.1} parent=0 // pred_region
    _
  $region21: #{edge_decoder.1} parent=0 // pred_fallthru
    _
  %v20 = vld [vmem:[%s0] sm:$0xff]
  %v21 = vld [vmem:[%s0 + $0x8] sm:$0xff]
  %v22 = vld [vmem:[%s1] sm:$0xff]
  %v23 = vld [vmem:[%s1 + $0x8] sm:$0xff]
  %v24 = vld [vmem:[%s1 + $0x10] sm:$0xff]
  %v25 = vld [vmem:[%s1 + $0x18] sm:$0xff]
  %v26 = vld [vmem:[%s1 + $0x20] sm:$0xff]
  %v27 = vld [vmem:[%s1 + $0x28] sm:$0xff]
  %v28 = vld [vmem:[%s1 + $0x30] sm:$0xff]
  %v29 = vld [vmem:[%s1 + $0x38] sm:$0xff]
  %v30 = vld [vmem:[%s2] sm:$0x1]
  %v32 = vlaneseq
  %v33 = vshrl.u32 %v32, 7
  %v34 = vsub.s32 0, %v33
  %v35 = vrot.slane %v30, %v34
  %vm37 = vcmask 523264
  %v39 = vsel %vm37, %v20, 0
  %v42 = vsel %vm37, %v21, 0
  %44 = vmatprep.subr.mxu0 0.0
  %45 = vmatpush1.msra.mxu0 %v22
  %46 = vmatprep.subr.mxu0 0.0
  %47 = vmatpush1.msra.mxu0 %v23
  %48 = vmatprep.subr.mxu0 0.0
  %49 = vmatpush1.msra.mxu0 %v24
  %50 = vmatprep.subr.mxu0 0.0
  %51 = vmatpush1.msra.mxu0 %v25
  %52 = vmatprep.subr.mxu0 0.0
  %53 = vmatpush1.msra.mxu0 %v26
  %54 = vmatprep.subr.mxu0 0.0
  %55 = vmatpush1.msra.mxu0 %v27
  %56 = vmatprep.subr.mxu0 0.0
  %57 = vmatpush1.msra.mxu0 %v28
  %58 = vmatprep.subr.mxu0 0.0
  %59 = vmatpush1.msra.mxu0 %v29
  %60 = vmatprep.subr.mxu0 0.0
  %61 = vmatpush1.msra.mxu0 0.0
  %62 = vmatprep.subr.mxu0 0.0
  %63 = vmatpush1.msra.mxu0 0.0
  %64 = vmatprep.subr.mxu0 0.0
  %65 = vmatpush1.msra.mxu0 0.0
  %66 = vmatprep.subr.mxu0 0.0
  %67 = vmatpush1.msra.mxu0 0.0
  %68 = vmatprep.subr.mxu0 0.0
  %69 = vmatpush1.msra.mxu0 0.0
  %70 = vmatprep.subr.mxu0 0.0
  %71 = vmatpush1.msra.mxu0 0.0
  %72 = vmatprep.subr.mxu0 0.0
  %73 = vmatpush1.msra.mxu0 0.0
  %74 = vmatprep.subr.mxu0 0.0
  %75 = vmatpush1.msra.mxu0 0.0
  %76 = vmatprep.subr.mxu0 0.0
  %77 = vmatpush1.msra.mxu0 0.0
  %78 = vmatprep.subr.mxu0 0.0
  %79 = vmatpush1.msra.mxu0 0.0
  %80 = vmatprep.subr.mxu0 0.0
  %81 = vmatpush1.msra.mxu0 0.0
  %82 = vmatprep.subr.mxu0 0.0
  %83 = vmatpush1.msra.mxu0 0.0
  %84 = vmatprep.subr.mxu0 0.0
  %85 = vmatpush1.msra.mxu0 0.0
  %86 = vmatprep.subr.mxu0 0.0
  %87 = vmatpush1.msra.mxu0 0.0
  %88 = vmatprep.subr.mxu0 0.0
  %89 = vmatpush1.msra.mxu0 0.0
  %90 = vmatprep.subr.mxu0 0.0
  %91 = vmatpush1.msra.mxu0 0.0
  %92 = vmatprep.subr.mxu0 0.0
  %93 = vmatpush1.msra.mxu0 0.0
  %94 = vmatprep.subr.mxu0 0.0
  %95 = vmatpush1.msra.mxu0 0.0
  %96 = vmatprep.subr.mxu0 0.0
  %97 = vmatpush1.msra.mxu0 0.0
  %98 = vmatprep.subr.mxu0 0.0
  %99 = vmatpush1.msra.mxu0 0.0
  %100 = vmatprep.subr.mxu0 0.0
  %101 = vmatpush1.msra.mxu0 0.0
  %102 = vmatprep.subr.mxu0 0.0
  %103 = vmatpush1.msra.mxu0 0.0
  %104 = vmatprep.subr.mxu0 0.0
  %105 = vmatpush1.msra.mxu0 0.0
  %106 = vmatprep.subr.mxu0 0.0
  %107 = vmatpush1.msra.mxu0 0.0
  %108 = vmatprep.mubr.f32.mxu0 0.0
  %109 = vmatmul.mubr.f32.gmra.mrb[0].mxu0 %v39
  %v110 = vpop.f32.mrb[0].mxu0
  %v111 = vadd.f32 %v35, %v110
  %v112 = vpop.f32.mrb[0].mxu0
  %113 = vmatprep.mubr.f32.mxu0 0.0
  %114 = vmatmul.mubr.f32.gmra.mrb[0].mxu0 %v42
  %v115 = vpop.f32.mrb[0].mxu0
  %v116 = vadd.f32 %v35, %v115
  %v117 = vpop.f32.mrb[0].mxu0
  %118 = vdwg.mxu0
  %v119 = vmax.f32 %v111, 0.0
  %v120 = vmax.f32 %v116, 0.0
  %v121 = vld [vmem:[%s3] sm:$0xff]
  %v122 = vld [vmem:[%s3 + $0x8] sm:$0xff]
  %v123 = vld [vmem:[%s3 + $0x10] sm:$0xff]
  %v124 = vld [vmem:[%s3 + $0x18] sm:$0xff]
  %v125 = vld [vmem:[%s4] sm:$0x1]
  %v127 = vlaneseq
  %v128 = vshrl.u32 %v127, 7
  %v129 = vsub.s32 0, %v128
  %v130 = vrot.slane %v125, %v129
  %vm132 = vcmask 261120
  %v134 = vsel %vm132, %v119, 0
  %v137 = vsel %vm132, %v120, 0
  %139 = vmatprep.subr.mxu0 0.0
  %140 = vmatpush1.msra.mxu0 %v121
  %141 = vmatprep.subr.mxu0 0.0
  %142 = vmatpush1.msra.mxu0 %v122
  %143 = vmatprep.subr.mxu0 0.0
  %144 = vmatpush1.msra.mxu0 %v123
  %145 = vmatprep.subr.mxu0 0.0
  %146 = vmatpush1.msra.mxu0 %v124
  %147 = vmatprep.subr.mxu0 0.0
  %148 = vmatpush1.msra.mxu0 0.0
  %149 = vmatprep.subr.mxu0 0.0
  %150 = vmatpush1.msra.mxu0 0.0
  %151 = vmatprep.subr.mxu0 0.0
  %152 = vmatpush1.msra.mxu0 0.0
  %153 = vmatprep.subr.mxu0 0.0
  %154 = vmatpush1.msra.mxu0 0.0
  %155 = vmatprep.subr.mxu0 0.0
  %156 = vmatpush1.msra.mxu0 0.0
  %157 = vmatprep.subr.mxu0 0.0
  %158 = vmatpush1.msra.mxu0 0.0
  %159 = vmatprep.subr.mxu0 0.0
  %160 = vmatpush1.msra.mxu0 0.0
  %161 = vmatprep.subr.mxu0 0.0
  %162 = vmatpush1.msra.mxu0 0.0
  %163 = vmatprep.subr.mxu0 0.0
  %164 = vmatpush1.msra.mxu0 0.0
  %165 = vmatprep.subr.mxu0 0.0
  %166 = vmatpush1.msra.mxu0 0.0
  %167 = vmatprep.subr.mxu0 0.0
  %168 = vmatpush1.msra.mxu0 0.0
  %169 = vmatprep.subr.mxu0 0.0
  %170 = vmatpush1.msra.mxu0 0.0
  %171 = vmatprep.subr.mxu0 0.0
  %172 = vmatpush1.msra.mxu0 0.0
  %173 = vmatprep.subr.mxu0 0.0
  %174 = vmatpush1.msra.mxu0 0.0
  %175 = vmatprep.subr.mxu0 0.0
  %176 = vmatpush1.msra.mxu0 0.0
  %177 = vmatprep.subr.mxu0 0.0
  %178 = vmatpush1.msra.mxu0 0.0
  %179 = vmatprep.subr.mxu0 0.0
  %180 = vmatpush1.msra.mxu0 0.0
  %181 = vmatprep.subr.mxu0 0.0
  %182 = vmatpush1.msra.mxu0 0.0
  %183 = vmatprep.subr.mxu0 0.0
  %184 = vmatpush1.msra.mxu0 0.0
  %185 = vmatprep.subr.mxu0 0.0
  %186 = vmatpush1.msra.mxu0 0.0
  %187 = vmatprep.subr.mxu0 0.0
  %188 = vmatpush1.msra.mxu0 0.0
  %189 = vmatprep.subr.mxu0 0.0
  %190 = vmatpush1.msra.mxu0 0.0
  %191 = vmatprep.subr.mxu0 0.0
  %192 = vmatpush1.msra.mxu0 0.0
  %193 = vmatprep.subr.mxu0 0.0
  %194 = vmatpush1.msra.mxu0 0.0
  %195 = vmatprep.subr.mxu0 0.0
  %196 = vmatpush1.msra.mxu0 0.0
  %197 = vmatprep.subr.mxu0 0.0
  %198 = vmatpush1.msra.mxu0 0.0
  %199 = vmatprep.subr.mxu0 0.0
  %200 = vmatpush1.msra.mxu0 0.0
  %201 = vmatprep.subr.mxu0 0.0
  %202 = vmatpush1.msra.mxu0 0.0
  %203 = vmatprep.mubr.f32.mxu0 0.0
  %204 = vmatmul.mubr.f32.gmra.mrb[0].mxu0 %v134
  %v205 = vpop.f32.mrb[0].mxu0
  %v206 = vadd.f32 %v130, %v205
  %v207 = vpop.f32.mrb[0].mxu0
  %208 = vmatprep.mubr.f32.mxu0 0.0
  %209 = vmatmul.mubr.f32.gmra.mrb[0].mxu0 %v137
  %v210 = vpop.f32.mrb[0].mxu0
  %v211 = vadd.f32 %v130, %v210
  %v212 = vpop.f32.mrb[0].mxu0
  %213 = vdwg.mxu0
  %v214 = vsub.f32 0.0, %v206
  %v215 = vsub.f32 0.0, %v211
  %v216 = vmul.f32 %v214, 1.442695
  %v217 = vpow.pop %v216
  %v218 = vmul.f32 %v215, 1.442695
  %v219 = vpow.pop %v218
  %v220 = vadd.f32 %v217, 1.0
  %v221 = vadd.f32 %v219, 1.0
  %v222 = vrcp.pop %v220
  %v223 = vmul.f32 1.0, %v222
  %v224 = vrcp.pop %v221
  %v225 = vmul.f32 1.0, %v224
  %vm226 = vcmask 15360
  %227 = vst.msk [vmem:[%s5] sm:$0xff] %vm226, %v223
  %228 = vst.msk [vmem:[%s5 + $0x8] sm:$0xff] %vm226, %v225
  // Predicated region
  $region22: #{edge_decoder.1} parent=0 // pred_check
    _
  $region23: #{edge_decoder.1} parent=0 // pred_check_branch
    %230 = sbr.rel (0) target = $region25
  $region24: #{edge_decoder.1} parent=0 // pred_region
    _
  $region25: #{edge_decoder.1} parent=0 // pred_fallthru
    _
  // Predicated region
  $region26: #{edge_decoder.1} parent=0 // pred_check
    _
  $region27: #{edge_decoder.1} parent=0 // pred_check_branch
    %232 = sbr.rel (0) target = $region29
  $region28: #{edge_decoder.1} parent=0 // pred_region
    _
  $region29: #{edge_decoder.1} parent=0 // pred_fallthru
    _

</llo_original>
